<compile_context>
chip_gen: v5e
topology: v5e:2x2
jax: 0.10.0
libtpu: 0.0.40
codegen_flags: <defaults>
</compile_context>

<pallas_src>
import jax
import jax.numpy as jnp
from jax.experimental import pallas as pl
from jax.experimental.pallas import tpu as pltpu

_LANE = 128


def _chomp1d_copy_kernel(x_ref, o_ref):
    # x_ref / o_ref: identical (TC, TT) VMEM tiles (batch dim squeezed).
    o_ref[...] = x_ref[...]


def _vmem_capacity_bytes():
    # Chip VMEM capacity; conservative fallback = v7x's 64 MiB physical VMEM.
    try:
        info = pltpu.get_tpu_info()
        cap = getattr(info, "vmem_capacity_bytes", None)
        if cap:
            return int(cap)
    except Exception:
        pass
    return 64 * 1024 * 1024


def chomp1d(x, chomp_size, *, force_pallas=False):
    """x: (B, C, T) array. Returns x[:, :, :T - chomp_size] as a fresh array."""
    B, C, T = x.shape
    if chomp_size == 0:
        # Intended no-op (nothing to chomp) — the TCN only uses chomp_size > 0.
        return x
    assert 0 < chomp_size < T, "chomp_size must be in (0, T)"
    T_out = T - chomp_size

    itemsize = jnp.dtype(x.dtype).itemsize
    out_bytes = B * C * T_out * itemsize

    # Fast path: tiny or lane-narrow outputs — XLA slice is already optimal and
    # avoids pallas_call launch overhead + masked vst partial stores.
    if not force_pallas and (T_out < _LANE or out_bytes < (2 << 20)):
        return jax.lax.slice_in_dim(x, 0, T_out, axis=2)

    # --- tile selection -----------------------------------------------------
    # Sublane granularity: 8 rows for 4-byte, 16 for 2-byte, 32 for 1-byte.
    sub = max(8, 32 // max(itemsize, 1))

    vmem_cap = _vmem_capacity_bytes()
    # ~2 MiB per buffer target; pipeline footprint = 4 * tile (in+out, 2-deep),
    # so ~8 MiB — comfortable on every generation, large enough for roofline.
    tile_budget = min(2 << 20, max(vmem_cap // 16, 512 * 1024))

    # Time tile: lane-aligned (multiple of 128), capped by budget at the
    # minimum channel tile, and by what is needed to cover T_out.
    tt_cover = pl.cdiv(T_out, _LANE) * _LANE
    tt_budget = max(_LANE, (tile_budget // (sub * itemsize)) // _LANE * _LANE)
    tt = min(tt_cover, tt_budget, 2048)

    # Channel tile: multiple of `sub`, or the full C (always a legal block dim).
    if C <= sub:
        tc = C
    else:
        cand = tile_budget // (tt * itemsize)
        cand = max(sub, (cand // sub) * sub)
        tc = C if cand >= C else cand

    grid = (B, pl.cdiv(C, tc), pl.cdiv(T_out, tt))

    # Pipeline footprint: in + out tiles, double-buffered. No extra 2x hedging;
    # clamp to the chip's real capacity (matters on v7x's 64 MiB).
    footprint = 4 * tc * tt * itemsize
    vmem_limit = int(min(max(footprint + (4 << 20), 32 << 20), vmem_cap))

    return pl.pallas_call(
        _chomp1d_copy_kernel,
        out_shape=jax.ShapeDtypeStruct((B, C, T_out), x.dtype),
        grid=grid,
        # Identical blocks for input and output over the kept window: the
        # chomped tail of x is never read from HBM, and the body is a plain
        # (lane-dense) copy.  Ragged last C/T blocks are handled by Pallas.
        in_specs=[pl.BlockSpec((None, tc, tt), lambda b, c, t: (b, c, t))],
        out_specs=pl.BlockSpec((None, tc, tt), lambda b, c, t: (b, c, t)),
        compiler_params=pltpu.CompilerParams(
            dimension_semantics=("parallel", "parallel", "parallel"),
            vmem_limit_bytes=vmem_limit,
        ),
    )(x)


def chomp1d_ref(x, chomp_size):
    # Pure-JAX reference mirroring the PyTorch forward.
    if chomp_size == 0:
        return x
    return x[:, :, :-chomp_size]


if __name__ == "__main__":
    key = jax.random.PRNGKey(0)

    # 1) Small NCT shape consistent with a TCN 1-D input (takes the fast path).
    B, C, T = 2, 4, 16
    chomp_size = 2
    x = jax.random.normal(key, (B, C, T), dtype=jnp.float32)
    out = chomp1d(x, chomp_size)
    jax.block_until_ready(out)
    ref = chomp1d_ref(x, chomp_size)
    assert out.shape == ref.shape and jnp.array_equal(out, ref)

    # 2) Same tiny shape, forcing the Pallas kernel path (ragged/partial tiles).
    out_k = chomp1d(x, chomp_size, force_pallas=True)
    jax.block_until_ready(out_k)
    assert out_k.shape == ref.shape and jnp.array_equal(out_k, ref)

    # 3) Lane-dense kernel path: T_out is a multiple of 128.
    B2, C2, T2, chomp2 = 2, 8, 320, 64
    x2 = jax.random.normal(jax.random.PRNGKey(1), (B2, C2, T2), dtype=jnp.float32)
    out2 = chomp1d(x2, chomp2, force_pallas=True)
    jax.block_until_ready(out2)
    ref2 = chomp1d_ref(x2, chomp2)
    assert out2.shape == ref2.shape and jnp.array_equal(out2, ref2)

    # 4) Ragged channel and time dims through the kernel path.
    B3, C3, T3, chomp3 = 2, 20, 300, 3
    x3 = jax.random.normal(jax.random.PRNGKey(2), (B3, C3, T3), dtype=jnp.float32)
    out3 = chomp1d(x3, chomp3, force_pallas=True)
    jax.block_until_ready(out3)
    ref3 = chomp1d_ref(x3, chomp3)
    assert out3.shape == ref3.shape and jnp.array_equal(out3, ref3)

    print("KERNEL_OK")
</pallas_src>

<mosaic_0001>
module attributes {stable_mosaic.version = 11 : i64} {
  func.func @_chomp1d_copy_kernel(%arg0: i32, %arg1: i32, %arg2: i32, %arg3: memref<1x4x128xf32, #tpu.memory_space<vmem>>, %arg4: memref<1x4x128xf32, #tpu.memory_space<vmem>>) attributes {dimension_semantics = [#tpu.dimension_semantics<parallel>, #tpu.dimension_semantics<parallel>, #tpu.dimension_semantics<parallel>], iteration_bounds = array<i64: 2, 1, 1>, scalar_prefetch = 0 : i64, scratch_operands = 0 : i64, tpu.core_type = #tpu.core_type<tc>, window_params = [{transform_indices = @transform_0, window_bounds = array<i64: 1, 4, 128>}, {transform_indices = @transform_1, window_bounds = array<i64: 1, 4, 128>}]} {
    %c0 = arith.constant 0 : index
    %c0_0 = arith.constant 0 : index
    %c0_1 = arith.constant 0 : index
    %0 = vector.load %arg3[%c0, %c0_0, %c0_1] : memref<1x4x128xf32, #tpu.memory_space<vmem>>, vector<1x4x128xf32>
    %1 = vector.shape_cast %0 : vector<1x4x128xf32> to vector<4x128xf32>
    %c0_2 = arith.constant 0 : index
    %c0_3 = arith.constant 0 : index
    %c0_4 = arith.constant 0 : index
    %2 = vector.load %arg4[%c0_2, %c0_3, %c0_4] : memref<1x4x128xf32, #tpu.memory_space<vmem>>, vector<1x4x128xf32>
    %3 = vector.shape_cast %2 : vector<1x4x128xf32> to vector<4x128xf32>
    %4 = vector.shape_cast %1 : vector<4x128xf32> to vector<1x4x128xf32>
    tpu.vector_store %arg4[%c0_2, %c0_3, %c0_4], %4 {strides = array<i32>} : memref<1x4x128xf32, #tpu.memory_space<vmem>>, vector<1x4x128xf32>,
    return
  }
  func.func @transform_0(%arg0: i32, %arg1: i32, %arg2: i32) -> (i32, i32, i32) {
    %c0_i32 = arith.constant 0 : i32
    return %arg0, %arg1, %arg2 : i32, i32, i32
  }
  func.func @transform_1(%arg0: i32, %arg1: i32, %arg2: i32) -> (i32, i32, i32) {
    %c0_i32 = arith.constant 0 : i32
    return %arg0, %arg1, %arg2 : i32, i32, i32
  }
}

</mosaic_0001>

<llo_original>
// kernel: tpu_custom_call.1
$region0: #{tpu_custom_call.1}
  #allocation0 [shape = 'u32[]', space=smem, size = 0x4, offset = 0x4, fixed_abs, tag = 'smem constant byte address 0x4 - core index']
  #allocation1 [shape = 'u32[72,128]{1,0:T(1,128)}', space=vmem, size = 0x9000, scoped, tag = 'internal scratch']
  %s0 = inlined_call_operand.hbm [shape: f32[2,4,16], index: 0, kind: input, shape index: {}]
  %s1 = inlined_call_operand.hbm [shape: f32[2,4,14], index: 1, kind: output, shape index: {}]
  %s2 = sld [smem:[#allocation0]]
  $region41: #{tpu_custom_call.1} parent=0
    _
  %s4 = ssub.s32 1, %s2
  %s5 = scalar_select 0, %s4, %s2
  $region1: #{tpu_custom_call.1} parent=0
    #allocation2 [shape = 'u8[4096]{0}', space=vmem, size = 0x1000, scoped, tag = 'input window, operand 0']
    #allocation3 [shape = 's32[2]{0}', space=sflag, size = 0x8, scoped, tag = 'scoped memory for tpu_custom_call.1']
    #allocation4 [shape = 's32[2]{0}', space=sflag, size = 0x8, scoped, tag = 'scoped memory for tpu_custom_call.1']
    #allocation5 [shape = 'u8[4096]{0}', space=vmem, size = 0x1000, scoped, tag = 'output window, operand 0']
    %6 = vsyncpa [#allocation3], 0
    %s7 = scalar_lea.sflag [#allocation3], 1
    %8 = vsyncpa %s7, 0
    %9 = vsyncpa [#allocation4], 0
    %s10 = scalar_lea.sflag [#allocation4], 1
    %11 = vsyncpa %s10, 0
    loop: start=0, step=1, limit=4
    $region2: #{tpu_custom_call.1} parent=1 // loop_pre_header
      _
    $region3: #{tpu_custom_call.1} parent=1 // loop_header
      %s13 = sphi 0, %s17
      %p14 = scmp.ge.s32.totalorder %s13, 4
      %s20 = sphi 0, %s39
      %s21 = sphi 0, %s35
      %s22 = sphi 0, %s31
      %s23 = sphi 0, %s20
      %s24 = sphi 0, %s21
      %s25 = sphi 0, %s22
      %s26 = sphi 0, %s23
      %s27 = sphi 0, %s24
      %s28 = sphi 0, %s25
      %s46 = sphi 0, %s48
      %s49 = sphi 0, %s46
      %s50 = sphi 0, %s49
      %s66 = sphi 0, %s50
      %s76 = sphi 0, %s78
      %s79 = sphi 0, %s76
      %s80 = sphi 0, %s79
      %s96 = sphi 0, %s80
    $region4: #{tpu_custom_call.1} parent=1 // loop_header_branch
      %16 = sbr.rel (%p14) target = $region8
    $region5: #{tpu_custom_call.1} parent=1 // loop_body
      %s18 = ssub.s32 %s13, 1
      %s19 = ssub.s32 %s13, 2
      %s29 = sadd.s32 1, %s22
      %p30 = scmp.ge.s32.totalorder %s29, 1
      %s31 = scalar_select %p30, 0, %s29
      %s32 = sadd.s32 1, %s21
      %s33 = scalar_select %p30, %s32, %s21
      %p34 = scmp.ge.s32.totalorder %s33, 1
      %s35 = scalar_select %p34, 0, %s33
      %s36 = sadd.s32 1, %s20
      %s37 = scalar_select %p34, %s36, %s20
      %p38 = scmp.ge.s32.totalorder %s37, 2
      %s39 = scalar_select %p38, 0, %s37
      %s40 = ssub.s32 %s20, %s39
      %s41 = ssub.s32 %s21, %s35
      %s42 = sor.u32 %s40, %s41
      %s43 = ssub.s32 %s22, %s31
      %s44 = sor.u32 %s42, %s43
      %p45 = scmp.eq.s32.totalorder %s44, 0
      %s47 = sadd.s32 %s46, 1
      %s48 = scalar_select %p45, %s46, %s47
      %p51 = pneg %p45
      %p52 = scmp.eq.s32.totalorder %s13, 1
      %p53 = por %p51, %p52
      %p54 = scmp.ne.s32.totalorder %s46, %s49
      %p55 = scmp.eq.s32.totalorder %s13, 0
      %p56 = por %p54, %p55
      %p57 = scmp.ne.s32.totalorder %s46, %s49
      %p58 = scmp.eq.s32.totalorder %s18, 1
      %p59 = por %p57, %p58
      %p60 = scmp.ne.s32.totalorder %s49, %s50
      %p61 = scmp.eq.s32.totalorder %s18, 0
      %p62 = por %p60, %p61
      %p63 = scmp.ne.s32.totalorder %s49, %s50
      %p64 = scmp.eq.s32.totalorder %s19, 1
      %p65 = por %p63, %p64
      %p67 = scmp.ne.s32.totalorder %s50, %s66
      %p68 = scmp.eq.s32.totalorder %s19, 0
      %p69 = por %p67, %p68
      %s70 = ssub.s32 %s20, %s39
      %s71 = ssub.s32 %s21, %s35
      %s72 = sor.u32 %s70, %s71
      %s73 = ssub.s32 %s22, %s31
      %s74 = sor.u32 %s72, %s73
      %p75 = scmp.eq.s32.totalorder %s74, 0
      %s77 = sadd.s32 %s76, 1
      %s78 = scalar_select %p75, %s76, %s77
      %p81 = pneg %p75
      %p82 = scmp.eq.s32.totalorder %s13, 1
      %p83 = por %p81, %p82
      %p84 = scmp.ne.s32.totalorder %s76, %s79
      %p85 = scmp.eq.s32.totalorder %s13, 0
      %p86 = por %p84, %p85
      %p87 = scmp.ne.s32.totalorder %s76, %s79
      %p88 = scmp.eq.s32.totalorder %s18, 1
      %p89 = por %p87, %p88
      %p90 = scmp.ne.s32.totalorder %s79, %s80
      %p91 = scmp.eq.s32.totalorder %s18, 0
      %p92 = por %p90, %p91
      %p93 = scmp.ne.s32.totalorder %s79, %s80
      %p94 = scmp.eq.s32.totalorder %s19, 1
      %p95 = por %p93, %p94
      %p97 = scmp.ne.s32.totalorder %s80, %s96
      %p98 = scmp.eq.s32.totalorder %s19, 0
      %p99 = por %p97, %p98
      %p100 = scmp.le.s32.totalorder 1, %s13
      %p101 = scmp.lt.s32.totalorder %s13, 3
      %p102 = pnand %p100, %p101
      %p103 = pneg %p102
      // Predicated region
      $region9: #{tpu_custom_call.1} parent=5 // pred_check
        _
      $region10: #{tpu_custom_call.1} parent=5 // pred_check_branch
        %105 = sbr.rel (%p102) target = $region12
      $region11: #{tpu_custom_call.1} parent=5 // pred_region
        %s106 = ssub.s32 %s13, 1
      $region12: #{tpu_custom_call.1} parent=5 // pred_fallthru
        _
      %p107 = scmp.lt.s32.totalorder %s13, 2
      // Predicated region
      $region13: #{tpu_custom_call.1} parent=5 // pred_check
        %p108 = pneg %p107
      $region14: #{tpu_custom_call.1} parent=5 // pred_check_branch
        %110 = sbr.rel (%p108) target = $region16
      $region15: #{tpu_custom_call.1} parent=5 // pred_region
        // Predicated region
        $region17: #{tpu_custom_call.1} parent=15 // pred_check
          %p111 = pneg %p56
        $region18: #{tpu_custom_call.1} parent=15 // pred_check_branch
          %113 = sbr.rel (%p111) target = $region20
        $region19: #{tpu_custom_call.1} parent=15 // pred_region
          %s114 = sand.u32 %s46, 1
          %s115 = scalar_lea.sflag [#allocation3], %s114
          %s116 = sand.u32 %s46, 1
          %s117 = smul.addr %s116, 4
          %s118 = scalar_lea.vmem [#allocation2], %s117
          %120 = vsyncadd %s115, 0
          %s121 = sadd.s32 %s22, %s21
          %s122 = sadd.s32 %s121, %s20
          %s123 = smul.addr %s122, 4
          %s124 = scalar_lea.hbm %s0, %s123
          %s126 = sshll.u32 %s124, 4
          %s127 = int_to_ptr.hbm [resolvable:$true] %s126
          %s128 = sshll.u32 %s118, 4
          %s129 = int_to_ptr.vmem [resolvable:$true] %s128
          %131 = dma.hbm_to_vmem [thread:$0]  %s127, 64, %s129, %s115
        $region20: #{tpu_custom_call.1} parent=15 // pred_fallthru
          _
      $region16: #{tpu_custom_call.1} parent=5 // pred_fallthru
        _
      %p132 = scmp.le.s32.totalorder 1, %s13
      %p133 = scmp.lt.s32.totalorder %s13, 3
      %p134 = pnand %p132, %p133
      %p135 = pneg %p134
      // Predicated region
      $region21: #{tpu_custom_call.1} parent=5 // pred_check
        _
      $region22: #{tpu_custom_call.1} parent=5 // pred_check_branch
        %137 = sbr.rel (%p134) target = $region24
      $region23: #{tpu_custom_call.1} parent=5 // pred_region
        %s138 = ssub.s32 %s13, 1
        %s139 = sand.u32 %s49, 1
        %s140 = scalar_lea.sflag [#allocation3], %s139
        %s141 = sand.u32 %s49, 1
        %s142 = smul.addr %s141, 4
        %s143 = scalar_lea.vmem [#allocation2], %s142
        // Predicated region
        $region25: #{tpu_custom_call.1} parent=23 // pred_check
          %p144 = pneg %p62
        $region26: #{tpu_custom_call.1} parent=23 // pred_check_branch
          %146 = sbr.rel (%p144) target = $region28
        $region27: #{tpu_custom_call.1} parent=23 // pred_region
          %148 = dma.done %s140, 64
        $region28: #{tpu_custom_call.1} parent=23 // pred_fallthru
          _
        %s149 = sand.u32 %s49, 1
        %s150 = scalar_lea.sflag [#allocation3], %s149
        %s151 = sand.u32 %s49, 1
        %s152 = smul.addr %s151, 4
        %s153 = scalar_lea.vmem [#allocation2], %s152
        %p154 = pneg %p62
        %p155 = pneg %p59
        %p156 = pneg %p92
        %p157 = pneg %p89
        %s158 = sand.u32 %s79, 1
        %s159 = scalar_lea.sflag [#allocation4], %s158
        %s160 = sand.u32 %s79, 1
        %s161 = smul.addr %s160, 4
        %s162 = scalar_lea.vmem [#allocation5], %s161
        %v163 = vld [vmem:[%s143] sm:$0xf]
        %164 = vst [vmem:[%s162] sm:$0xf] %v163
        %s165 = sand.u32 %s79, 1
        %s166 = scalar_lea.sflag [#allocation4], %s165
        %s167 = sand.u32 %s79, 1
        %s168 = smul.addr %s167, 4
        %s169 = scalar_lea.vmem [#allocation5], %s168
        // Predicated region
        $region29: #{tpu_custom_call.1} parent=23 // pred_check
          %p170 = pneg %p89
        $region30: #{tpu_custom_call.1} parent=23 // pred_check_branch
          %172 = sbr.rel (%p170) target = $region32
        $region31: #{tpu_custom_call.1} parent=23 // pred_region
          %174 = vsyncadd %s166, 0
          %s175 = sadd.s32 %s25, %s24
          %s176 = sadd.s32 %s175, %s23
          %s177 = smul.addr %s176, 4
          %s178 = scalar_lea.hbm %s1, %s177
          %s180 = sshll.u32 %s169, 4
          %s181 = int_to_ptr.vmem [resolvable:$true] %s180
          %s182 = sshll.u32 %s178, 4
          %s183 = int_to_ptr.hbm [resolvable:$true] %s182
          %185 = dma.vmem_to_hbm [thread:$0]  %s181, 64, %s183, %s166
        $region32: #{tpu_custom_call.1} parent=23 // pred_fallthru
          _
      $region24: #{tpu_custom_call.1} parent=5 // pred_fallthru
        _
      %p186 = scmp.le.s32.totalorder 2, %s13
      // Predicated region
      $region33: #{tpu_custom_call.1} parent=5 // pred_check
        %p187 = pneg %p186
      $region34: #{tpu_custom_call.1} parent=5 // pred_check_branch
        %189 = sbr.rel (%p187) target = $region36
      $region35: #{tpu_custom_call.1} parent=5 // pred_region
        %s190 = ssub.s32 %s13, 2
        // Predicated region
        $region37: #{tpu_custom_call.1} parent=35 // pred_check
          %p191 = pneg %p95
        $region38: #{tpu_custom_call.1} parent=35 // pred_check_branch
          %193 = sbr.rel (%p191) target = $region40
        $region39: #{tpu_custom_call.1} parent=35 // pred_region
          %s194 = sand.u32 %s80, 1
          %s195 = scalar_lea.sflag [#allocation4], %s194
          %s196 = sand.u32 %s80, 1
          %s197 = smul.addr %s196, 4
          %s198 = scalar_lea.vmem [#allocation5], %s197
          %200 = dma.done %s195, 64
        $region40: #{tpu_custom_call.1} parent=35 // pred_fallthru
          _
      $region36: #{tpu_custom_call.1} parent=5 // pred_fallthru
        _
    $region6: #{tpu_custom_call.1} parent=1 // loop_footer
      %s17 = sadd.s32 1, %s13
    $region7: #{tpu_custom_call.1} parent=1 // loop_footer_branch
      %12 = sbr.rel target = $region3
    $region8: #{tpu_custom_call.1} parent=1 // loop_exit
      _
    %201 = vsyncpa [#allocation3], 1
    %s202 = scalar_lea.sflag [#allocation3], 1
    %203 = vsyncpa %s202, 1
    %204 = vsyncpa [#allocation4], 1
    %s205 = scalar_lea.sflag [#allocation4], 1
    %206 = vsyncpa %s205, 1

</llo_original>
